<compile_context>
chip_gen: v6e
topology: v6e:2x2x1
jax: 0.10.0
libtpu: 0.0.40
codegen_flags: <defaults>
</compile_context>

<pallas_src>
import jax
import jax.numpy as jnp
from jax.experimental import pallas as pl
from jax.experimental.pallas import tpu as pltpu

LANE = 128      # vreg lane width (last-dim tiling)
SUBLANE = 8     # f32 sublane tiling (second-to-last dim)


def _cdiv(a, b):
    return (a + b - 1) // b


def _round_up(n, m):
    return _cdiv(n, m) * m


def _pick_tile_rows(total_rows, bytes_per_row_pipelined, *,
                    min_tile_bytes=4 << 20, max_tile_bytes=16 << 20,
                    grid_target=8):
    """Rows of data per grid step.

    `bytes_per_row_pipelined` is the full double-buffered, lane-padded VMEM
    cost per data row, so min/max_tile_bytes bound total pipelined VMEM.
    Prefers >= grid_target steps (feeds both v7x TensorCores) but never lets a
    step fall below ~min_tile_bytes: this kernel is pure HBM streaming and
    per-grid-step overhead is ~0.35 us.
    """
    rows_for_grid = _cdiv(total_rows, grid_target)
    rows_min = max(1, min_tile_bytes // bytes_per_row_pipelined)
    rows_max = max(1, max_tile_bytes // bytes_per_row_pipelined)
    rows = max(rows_min, min(rows_for_grid, rows_max))
    rows = min(rows, total_rows)
    if rows >= LANE:
        rows = (rows // LANE) * LANE          # lane-dense, unmasked stores
    else:
        rows = _round_up(max(rows, 1), SUBLANE)
    return rows


def _vmem_limit_bytes(needed):
    # Generous margin, floor at the 32 MiB scoped default, cap comfortably
    # below v7x's 64 MiB physical VMEM (v5e/v6e have 128 MiB physical).
    return int(min(48 << 20, max(32 << 20, (needed * 3) // 2)))


# --------------------------------------------------------------------------
# General path: arbitrary F. VPU multiply + lane reduce, lane-dense output.
# --------------------------------------------------------------------------
def _rowsum_kernel(x_ref, w_ref, b_ref, o_ref):
    x = x_ref[...]                         # [TB, F]  (pipelined over batch)
    w = w_ref[...]                         # [1,  F]  (resident: constant index_map)
    b = b_ref[0, 0]                        # scalar   (SMEM)
    # Output width is 1 -> skip the MXU: VPU multiply + lane reduce.
    y = jnp.sum(x * w, axis=-1) + b        # [TB]
    # Lane-dense store: one [1, 1, TB] row per grid step (no width-1 vst.msk).
    o_ref[...] = y.reshape(1, 1, -1).astype(o_ref.dtype)


def _linear_general(x, weight, bias):
    B, F = x.shape
    f_pad = _round_up(F, LANE)                       # lane padding of x tile in VMEM
    # Per data row: x (double-buffered) + its output element (double-buffered).
    per_row = 2 * f_pad * 4 + 2 * 4
    tb = _pick_tile_rows(B, per_row)
    grid = _cdiv(B, tb)                              # ragged final block; no jnp.pad copy

    vmem_needed = (2 * tb * f_pad * 4                       # x double buffer
                   + 2 * SUBLANE * f_pad * 4                # resident weight (2 buffers)
                   + 2 * SUBLANE * _round_up(tb, LANE) * 4)  # output block

    out = pl.pallas_call(
        _rowsum_kernel,
        out_shape=jax.ShapeDtypeStruct((grid, 1, tb), jnp.float32),
        grid=(grid,),
        in_specs=[
            pl.BlockSpec((tb, F), lambda i: (i, 0)),              # x tile, pipelined
            pl.BlockSpec((1, F), lambda i: (0, 0)),               # weight, resident
            pl.BlockSpec(memory_space=pltpu.MemorySpace.SMEM),    # bias scalar
        ],
        out_specs=pl.BlockSpec((1, 1, tb), lambda i: (i, 0, 0)),  # lane-dense row
        compiler_params=pltpu.CompilerParams(
            dimension_semantics=("parallel",),        # shard batch axis across TCs (v7x)
            vmem_limit_bytes=_vmem_limit_bytes(vmem_needed),
        ),
    )(x, weight, bias.reshape(1, 1))
    # Row-major flatten of (grid, 1, tb) preserves batch order.
    return out.reshape(grid * tb, 1)[:B]


# --------------------------------------------------------------------------
# Lane-packed path: F < 128, 128 % F == 0, B % (128//F) == 0.
# x is reshaped (free) to [B*F/128, 128]; MXU matmul against a block-diagonal
# [128, 128//F] weight gives one output per packed batch row -> dense DMAs.
# --------------------------------------------------------------------------
def _packed_kernel(x_ref, wbd_ref, b_ref, o_ref):
    # x_ref:   [TR, 128]      lane-packed rows (128//F batch rows per packed row)
    # wbd_ref: [128, 128//F]  block-diagonal weight (resident)
    y = jnp.dot(x_ref[...], wbd_ref[...], preferred_element_type=jnp.float32)
    o_ref[...] = (y + b_ref[0, 0]).astype(o_ref.dtype)


def _linear_lane_packed(x, weight, bias, rows_per):
    B, F = x.shape
    R = B // rows_per                        # packed rows (B % rows_per == 0)
    x_packed = x.reshape(R, LANE)            # free row-major relabel, no HBM copy
    # Block-diagonal weight: column j carries w over lanes [j*F, (j+1)*F).
    w_bd = jnp.kron(jnp.eye(rows_per, dtype=jnp.float32), weight.reshape(F, 1))

    out_lanes = _round_up(rows_per, LANE)    # lane padding of output tile in VMEM
    per_row = 2 * LANE * 4 + 2 * out_lanes * 4
    tr = _pick_tile_rows(R, per_row)
    grid = _cdiv(R, tr)                      # ragged final block is fine

    vmem_needed = (2 * tr * LANE * 4
                   + 2 * LANE * out_lanes * 4
                   + 2 * tr * out_lanes * 4)

    out = pl.pallas_call(
        _packed_kernel,
        out_shape=jax.ShapeDtypeStruct((R, rows_per), jnp.float32),
        grid=(grid,),
        in_specs=[
            pl.BlockSpec((tr, LANE), lambda i: (i, 0)),           # packed x, pipelined
            pl.BlockSpec((LANE, rows_per), lambda i: (0, 0)),     # block-diag W, resident
            pl.BlockSpec(memory_space=pltpu.MemorySpace.SMEM),    # bias scalar
        ],
        out_specs=pl.BlockSpec((tr, rows_per), lambda i: (i, 0)),
        compiler_params=pltpu.CompilerParams(
            dimension_semantics=("parallel",),
            vmem_limit_bytes=_vmem_limit_bytes(vmem_needed),
        ),
    )(x_packed, w_bd, bias.reshape(1, 1))
    # (r, j) -> batch row r*rows_per + j; row-major flatten preserves order.
    return out.reshape(B, 1)


# --------------------------------------------------------------------------
# Public forward
# --------------------------------------------------------------------------
def linear_net_forward(x, weight, bias):
    """LinearNet forward: y = x @ weight.T + bias.

    x: [B, F] float32, weight: [1, F], bias: [1]  ->  y: [B, 1] float32.
    """
    x = x.astype(jnp.float32)
    weight = weight.astype(jnp.float32)
    bias = bias.astype(jnp.float32)
    B, F = x.shape
    assert weight.shape == (1, F) and bias.shape == (1,)

    if F < LANE and LANE % F == 0:
        rows_per = LANE // F
        if B >= rows_per and B % rows_per == 0:
            return _linear_lane_packed(x, weight, bias, rows_per)
        # TODO(synk): for B % (128//F) != 0 we fall back to the lane-sparse
        # general path; packing that case would need a pad/slice that copies
        # x in HBM, which costs more than it saves for this mem-bound kernel.
    # TODO(synk): F so large that a single (8, F) tile overflows VMEM would
    # need a reduction grid axis over F; irrelevant for this regression module.
    return _linear_general(x, weight, bias)


if __name__ == "__main__":
    key = jax.random.PRNGKey(0)
    k_w, k_b, k_x1, k_x2, k_x3 = jax.random.split(key, 5)

    n_feature = 2                       # classic 2-feature linear regression
    bound = 1.0 / (n_feature ** 0.5)    # mimics nn.Linear's uniform init range
    weight = jax.random.uniform(k_w, (1, n_feature), jnp.float32, -bound, bound)
    bias = jax.random.uniform(k_b, (1,), jnp.float32, -bound, bound)

    fwd = jax.jit(linear_net_forward)

    def ref(xv):
        return xv @ weight.T + bias

    # 1) Small batch -> general row-sum path (single grid step).
    x1 = jax.random.normal(k_x1, (8, n_feature), dtype=jnp.float32)
    y1 = jax.block_until_ready(fwd(x1, weight, bias))
    assert y1.shape == (8, 1)
    assert jnp.allclose(y1, ref(x1), atol=1e-5), "mismatch (general path, small batch)"

    # 2) Batch divisible by 128//F -> lane-packed MXU path.
    x2 = jax.random.normal(k_x2, (512, n_feature), dtype=jnp.float32)
    y2 = jax.block_until_ready(fwd(x2, weight, bias))
    assert y2.shape == (512, 1)
    assert jnp.allclose(y2, ref(x2), atol=1e-5), "mismatch (lane-packed path)"

    # 3) Ragged batch -> general path, grid > 1 with a partial final block (no pad).
    x3 = jax.random.normal(k_x3, (300, n_feature), dtype=jnp.float32)
    y3 = jax.block_until_ready(fwd(x3, weight, bias))
    assert y3.shape == (300, 1)
    assert jnp.allclose(y3, ref(x3), atol=1e-5), "mismatch (general path, ragged batch)"

    print("KERNEL_OK")
</pallas_src>

<mosaic_0001>
module attributes {stable_mosaic.version = 11 : i64} {
  func.func @_rowsum_kernel(%arg0: i32, %arg1: memref<8x2xf32, #tpu.memory_space<vmem>>, %arg2: memref<1x2xf32, #tpu.memory_space<vmem>>, %arg3: memref<1x1xf32, #tpu.memory_space<smem>>, %arg4: memref<1x1x8xf32, #tpu.memory_space<vmem>>) attributes {dimension_semantics = [#tpu.dimension_semantics<parallel>], iteration_bounds = array<i64: 1>, scalar_prefetch = 0 : i64, scratch_operands = 0 : i64, tpu.core_type = #tpu.core_type<tc>, window_params = [{transform_indices = @transform_0, window_bounds = array<i64: 8, 2>}, {pipeline_mode = #tpu.pipeline_mode<synchronous>, transform_indices = @transform_1, window_bounds = array<i64: 1, 2>}, {transform_indices = @transform_2, window_bounds = array<i64: 1, 1>}, {transform_indices = @transform_3, window_bounds = array<i64: 1, 1, 8>}]} {
    %c0 = arith.constant 0 : index
    %c0_0 = arith.constant 0 : index
    %0 = vector.load %arg1[%c0, %c0_0] : memref<8x2xf32, #tpu.memory_space<vmem>>, vector<8x2xf32>
    %c0_1 = arith.constant 0 : index
    %c0_2 = arith.constant 0 : index
    %1 = vector.load %arg2[%c0_1, %c0_2] : memref<1x2xf32, #tpu.memory_space<vmem>>, vector<1x2xf32>
    %c0_3 = arith.constant 0 : index
    %c0_4 = arith.constant 0 : index
    %2 = memref.load %arg3[%c0_3, %c0_4] : memref<1x1xf32, #tpu.memory_space<smem>>
    %3 = vector.broadcast %1 : vector<1x2xf32> to vector<8x2xf32>
    %4 = arith.mulf %0, %3 : vector<8x2xf32>
    %cst = arith.constant dense<0.000000e+00> : vector<8xf32>
    %5 = vector.multi_reduction <add>, %4, %cst [1] : vector<8x2xf32> to vector<8xf32>
    %6 = vector.broadcast %2 : f32 to vector<8xf32>
    %7 = arith.addf %5, %6 : vector<8xf32>
    %8 = vector.shape_cast %7 : vector<8xf32> to vector<1x1x8xf32>
    %c0_5 = arith.constant 0 : index
    %c0_6 = arith.constant 0 : index
    %c0_7 = arith.constant 0 : index
    %9 = vector.load %arg4[%c0_5, %c0_6, %c0_7] : memref<1x1x8xf32, #tpu.memory_space<vmem>>, vector<1x1x8xf32>
    tpu.vector_store %arg4[%c0_5, %c0_6, %c0_7], %8 {strides = array<i32>} : memref<1x1x8xf32, #tpu.memory_space<vmem>>, vector<1x1x8xf32>,
    return
  }
  func.func @transform_0(%arg0: i32) -> (i32, i32) {
    %c0_i32 = arith.constant 0 : i32
    %c0_i32_0 = arith.constant 0 : i32
    return %arg0, %c0_i32 : i32, i32
  }
  func.func @transform_1(%arg0: i32) -> (i32, i32) {
    %c0_i32 = arith.constant 0 : i32
    %c0_i32_0 = arith.constant 0 : i32
    %c0_i32_1 = arith.constant 0 : i32
    return %c0_i32, %c0_i32_0 : i32, i32
  }
  func.func @transform_2(%arg0: i32) -> (i32, i32) {
    %c0_i32 = arith.constant 0 : i32
    %c0_i32_0 = arith.constant 0 : i32
    %c0_i32_1 = arith.constant 0 : i32
    return %c0_i32, %c0_i32_0 : i32, i32
  }
  func.func @transform_3(%arg0: i32) -> (i32, i32, i32) {
    %c0_i32 = arith.constant 0 : i32
    %c0_i32_0 = arith.constant 0 : i32
    %c0_i32_1 = arith.constant 0 : i32
    return %arg0, %c0_i32, %c0_i32_0 : i32, i32, i32
  }
}

</mosaic_0001>

<llo_original>
// kernel: linear_net_forward.1
$region0: #{linear_net_forward.1}
  #allocation0 [shape = 'u32[]', space=smem, size = 0x4, offset = 0x4, fixed_abs, tag = 'smem constant byte address 0x4 - core index']
  #allocation1 [shape = 'u32[144,128]{1,0:T(1,128)}', space=vmem, size = 0x12000, scoped, tag = 'internal scratch']
  #allocation2 [shape = 'f32[1,1]{1,0:T(1,128)S(6)}', space=smem, size = 0x200, scoped, tag = 'scoped memory for linear_net_forward.1']
  %s0 = inlined_call_operand.vmem [shape: f32[8,2], index: 0, kind: input, shape index: {}]
  %s1 = inlined_call_operand.vmem [shape: f32[1,2], index: 1, kind: input, shape index: {}]
  %s2 = inlined_call_operand.<no memory space> [shape: f32[1,1], index: 2, kind: input, shape index: {}]
  %s3 = inlined_call_operand.hbm [shape: f32[1,1,8], index: 3, kind: output, shape index: {}]
  %s4 = sld [smem:[#allocation0]]
  $region22: #{linear_net_forward.1} parent=0
    _
  %s6 = ssub.s32 1, %s4
  %s7 = scalar_select 0, %s6, %s4
  %8 = sst [smem:[#allocation2]] %s2
  $region1: #{linear_net_forward.1} parent=0
    #allocation3 [shape = 'u8[512]{0}', space=vmem, size = 0x400, scoped, tag = 'output window, operand 0, single buffered']
    #allocation4 [shape = 's32[1]{0}', space=sflag, size = 0x4, scoped, tag = 'scoped memory for linear_net_forward.1']
    %9 = vsyncpa [#allocation4], 0
    // Predicated region
    $region2: #{linear_net_forward.1} parent=1 // pred_check
      _
    $region3: #{linear_net_forward.1} parent=1 // pred_check_branch
      %11 = sbr.rel (0) target = $region5
    $region4: #{linear_net_forward.1} parent=1 // pred_region
      _
    $region5: #{linear_net_forward.1} parent=1 // pred_fallthru
      _
    // Predicated region
    $region6: #{linear_net_forward.1} parent=1 // pred_check
      _
    $region7: #{linear_net_forward.1} parent=1 // pred_check_branch
      %13 = sbr.rel (0) target = $region9
    $region8: #{linear_net_forward.1} parent=1 // pred_region
      _
    $region9: #{linear_net_forward.1} parent=1 // pred_fallthru
      _
    // Predicated region
    $region10: #{linear_net_forward.1} parent=1 // pred_check
      _
    $region11: #{linear_net_forward.1} parent=1 // pred_check_branch
      %15 = sbr.rel (0) target = $region13
    $region12: #{linear_net_forward.1} parent=1 // pred_region
      _
    $region13: #{linear_net_forward.1} parent=1 // pred_fallthru
      _
    %v16 = vld [vmem:[%s0] sm:$0xff]
    %v17 = vld [vmem:[%s1] sm:$0x1]
    %s18 = sld [smem:[#allocation2]]
    %v20 = vlaneseq
    %v21 = vshrl.u32 %v20, 7
    %v22 = vsub.s32 0, %v21
    %v23 = vrot.slane %v17, %v22
    %v25 = vmul.f32 %v16, %v23
    %vm26 = vcmask 15360
    %v27 = vsel %vm26, %v25, 0.0
    %28 = vadd.xlane.f32.xlu0 %v27
    %v29 = vpop.xlane.xlu0 %28
    %v30 = vstv %s18
    %v31 = vadd.f32 %v29, %v30
    %v33 = vlaneseq
    %v34 = vand.u32 %v33, 127
    %v35 = vlaneseq
    %v36 = vshrl.u32 %v35, 7
    %v37 = vsub.s32 %v34, %v36
    %v38 = vrot.slane %v31, %v37
    %vm40 = vcmask 57344
    %41 = vst.msk [vmem:[#allocation3] sm:$0x1] %vm40, %v38
    // Predicated region
    $region14: #{linear_net_forward.1} parent=1 // pred_check
      _
    $region15: #{linear_net_forward.1} parent=1 // pred_check_branch
      %43 = sbr.rel (0) target = $region17
    $region16: #{linear_net_forward.1} parent=1 // pred_region
      %s45 = ssub.s32 16, 16
      %46 = vsyncadd [#allocation4], %s45
      %s48 = sshll.u32 [#allocation3], 4
      %s49 = int_to_ptr.vmem [resolvable:$true] %s48
      %51 = dma.vmem_to_hbm [thread:$0]  %s49, 16, %s3, [#allocation4]
    $region17: #{linear_net_forward.1} parent=1 // pred_fallthru
      _
    // Predicated region
    $region18: #{linear_net_forward.1} parent=1 // pred_check
      _
    $region19: #{linear_net_forward.1} parent=1 // pred_check_branch
      %53 = sbr.rel (0) target = $region21
    $region20: #{linear_net_forward.1} parent=1 // pred_region
      %54 = dma.done [#allocation4], 16
    $region21: #{linear_net_forward.1} parent=1 // pred_fallthru
      _
    %55 = vsyncpa [#allocation4], 1

</llo_original>
